<compile_context>
chip_gen: v5e
topology: v5e:2x2
jax: 0.10.0
libtpu: 0.0.40
codegen_flags: <defaults>
</compile_context>

<pallas_src>
import jax
import jax.numpy as jnp
from jax.experimental import pallas as pl
from jax.experimental.pallas import tpu as pltpu


def _pick_hw_tile(hw, cap=1024):
    """Largest lane-dense tile of the flattened spatial axis."""
    if hw <= cap:
        return hw                      # full plane (also satisfies full-dim rule)
    if hw % 128 == 0:
        for t in (1024, 512, 256, 128):
            if t <= cap and hw % t == 0:
                return t
    return hw                          # fallback: full plane per batch element


def _make_fused_kernel(num_scales):
    """Kernel over refs ordered as:
       [xh_0..xh_{S-1}, xc_0..xc_{S-1}, wh_0.., bh_0.., wc_0.., bc_0.., oh, oc]
    """
    S = num_scales

    def kernel(*refs):
        xh = refs[0 * S:1 * S]          # (1, Cin_s, thw)
        xc = refs[1 * S:2 * S]
        wh = refs[2 * S:3 * S]          # (Cout_s, Cin_s)
        bh = refs[3 * S:4 * S]          # (Cout_s, 1)
        wc = refs[4 * S:5 * S]
        bc = refs[5 * S:6 * S]
        oh_ref = refs[6 * S]            # (1, Cout_total, thw)
        oc_ref = refs[6 * S + 1]

        h_parts = []
        c_parts = []
        for s in range(S):
            acc = jnp.dot(wh[s][...], xh[s][0],
                          preferred_element_type=jnp.float32)
            h_parts.append(jnp.maximum(acc + bh[s][...], 0.0))
            acc = jnp.dot(wc[s][...], xc[s][0],
                          preferred_element_type=jnp.float32)
            c_parts.append(jnp.maximum(acc + bc[s][...], 0.0))

        if S == 1:
            oh_ref[0] = h_parts[0].astype(oh_ref.dtype)
            oc_ref[0] = c_parts[0].astype(oc_ref.dtype)
        else:
            # Channel concat done in-register; single lane-dense full-tile store.
            oh_ref[0] = jnp.concatenate(h_parts, axis=0).astype(oh_ref.dtype)
            oc_ref[0] = jnp.concatenate(c_parts, axis=0).astype(oc_ref.dtype)

    return kernel


def fusion_forward(h_list, c_list, params_h, params_c):
    """Fused 1x1-conv + ReLU for all scales and both branches.

    h_list[i], c_list[i] : (N, Cin_i, H, W) float32  (same N, H, W for all i)
    params_*[i]          : (weight (Cout_i, Cin_i, 1, 1), bias (Cout_i,))
    returns              : ((N, sum(Cout), H, W), (N, sum(Cout), H, W))
    """
    S = len(h_list)
    N, _, H, W = h_list[0].shape
    HW = H * W
    cin_list = [int(x.shape[1]) for x in h_list]
    cout_list = [int(w.shape[0]) for (w, _) in params_h]
    cout_total = sum(cout_list)

    for x in list(h_list) + list(c_list):
        assert x.shape[0] == N and x.shape[2] == H and x.shape[3] == W, \
            "channel concat requires identical N, H, W across scales"

    thw = _pick_hw_tile(HW)
    n_hw = HW // thw

    # Glue (all free): NCHW -> (N, Cin, H*W) contiguous reshapes, no transpose.
    xh = [x.reshape(N, c, HW) for x, c in zip(h_list, cin_list)]
    xc = [x.reshape(N, c, HW) for x, c in zip(c_list, cin_list)]
    whs = [w[:, :, 0, 0] for (w, _) in params_h]          # (Cout, Cin)
    bhs = [b.reshape(-1, 1) for (_, b) in params_h]       # (Cout, 1) — lane broadcast
    wcs = [w[:, :, 0, 0] for (w, _) in params_c]
    bcs = [b.reshape(-1, 1) for (_, b) in params_c]

    x_specs = [pl.BlockSpec((1, c, thw), lambda n, j: (n, 0, j)) for c in cin_list]
    w_specs = [pl.BlockSpec((co, ci), lambda n, j: (0, 0))
               for ci, co in zip(cin_list, cout_list)]
    b_specs = [pl.BlockSpec((co, 1), lambda n, j: (0, 0)) for co in cout_list]
    out_spec = pl.BlockSpec((1, cout_total, thw), lambda n, j: (n, 0, j))

    kernel = _make_fused_kernel(S)

    oh, oc = pl.pallas_call(
        kernel,
        out_shape=(jax.ShapeDtypeStruct((N, cout_total, HW), jnp.float32),
                   jax.ShapeDtypeStruct((N, cout_total, HW), jnp.float32)),
        grid_spec=pltpu.PrefetchScalarGridSpec(
            num_scalar_prefetch=0,
            grid=(N, n_hw),
            in_specs=(x_specs + x_specs          # xh..., xc...
                      + w_specs + b_specs        # wh..., bh...
                      + w_specs + b_specs),      # wc..., bc...
            out_specs=(out_spec, out_spec),
        ),
        compiler_params=pltpu.CompilerParams(
            dimension_semantics=("parallel", "parallel"),
            vmem_limit_bytes=64 * 1024 * 1024,
        ),
    )(*(xh + xc + whs + bhs + wcs + bcs))

    return (oh.reshape(N, cout_total, H, W),
            oc.reshape(N, cout_total, H, W))


class FusionModelPallas:
    """JAX/Pallas equivalent of Fusion_model: per-scale 1x1 conv + ReLU, concat."""

    def __init__(self, filters_list_input, filters_list_output, key):
        self.filters_list_input = list(filters_list_input)
        self.filters_list_output = list(filters_list_output)
        self.params_h = []
        self.params_c = []
        for i, (cin, cout) in enumerate(zip(self.filters_list_input,
                                            self.filters_list_output)):
            kh = jax.random.fold_in(key, 2 * i)
            kc = jax.random.fold_in(key, 2 * i + 1)
            # deterministic init, PyTorch Conv2d weight layout (Cout, Cin, 1, 1)
            wh = 0.1 * jax.random.normal(kh, (cout, cin, 1, 1), jnp.float32)
            bh = 0.01 * jnp.arange(cout, dtype=jnp.float32)
            wc = 0.1 * jax.random.normal(kc, (cout, cin, 1, 1), jnp.float32)
            bc = -0.01 * jnp.arange(cout, dtype=jnp.float32)
            self.params_h.append((wh, bh))
            self.params_c.append((wc, bc))

    def __call__(self, h_list, c_list):
        return fusion_forward(h_list, c_list, self.params_h, self.params_c)


def _reference(h_list, c_list, model):
    """Pure-JAX reference for correctness."""
    def conv(x, w, b):
        y = jnp.einsum('nchw,oc->nohw', x, w[:, :, 0, 0]) + b[None, :, None, None]
        return jnp.maximum(y, 0.0)
    h = jnp.concatenate(
        [conv(h_list[i], *model.params_h[i]) for i in range(len(h_list))], axis=1)
    c = jnp.concatenate(
        [conv(c_list[i], *model.params_c[i]) for i in range(len(c_list))], axis=1)
    return h, c


if __name__ == "__main__":
    key = jax.random.PRNGKey(0)

    # Two scales, same spatial size (required for the channel concat).
    filters_in = [4, 8]
    filters_out = [8, 16]
    N, H, W = 2, 16, 16          # HW = 256 -> lane-dense tiles

    kdata = jax.random.fold_in(key, 1000)
    h_list, c_list = [], []
    for i, cin in enumerate(filters_in):
        kh = jax.random.fold_in(kdata, 2 * i)
        kc = jax.random.fold_in(kdata, 2 * i + 1)
        h_list.append(jax.random.normal(kh, (N, cin, H, W), jnp.float32))
        c_list.append(jax.random.normal(kc, (N, cin, H, W), jnp.float32))

    model = FusionModelPallas(filters_in, filters_out, jax.random.fold_in(key, 7))

    h_out, c_out = model(h_list, c_list)
    h_out = jax.block_until_ready(h_out)
    c_out = jax.block_until_ready(c_out)

    assert h_out.shape == (N, sum(filters_out), H, W), h_out.shape
    assert c_out.shape == (N, sum(filters_out), H, W), c_out.shape

    h_ref, c_ref = _reference(h_list, c_list, model)
    assert jnp.allclose(h_out, h_ref, atol=1e-4, rtol=1e-4), \
        float(jnp.max(jnp.abs(h_out - h_ref)))
    assert jnp.allclose(c_out, c_ref, atol=1e-4, rtol=1e-4), \
        float(jnp.max(jnp.abs(c_out - c_ref)))

    print("KERNEL_OK")
</pallas_src>

<mosaic_0001>
module attributes {stable_mosaic.version = 11 : i64} {
  func.func @kernel(%arg0: i32, %arg1: i32, %arg2: memref<1x4x256xf32, #tpu.memory_space<vmem>>, %arg3: memref<1x8x256xf32, #tpu.memory_space<vmem>>, %arg4: memref<1x4x256xf32, #tpu.memory_space<vmem>>, %arg5: memref<1x8x256xf32, #tpu.memory_space<vmem>>, %arg6: memref<8x4xf32, #tpu.memory_space<vmem>>, %arg7: memref<16x8xf32, #tpu.memory_space<vmem>>, %arg8: memref<8x1xf32, #tpu.memory_space<vmem>>, %arg9: memref<16x1xf32, #tpu.memory_space<vmem>>, %arg10: memref<8x4xf32, #tpu.memory_space<vmem>>, %arg11: memref<16x8xf32, #tpu.memory_space<vmem>>, %arg12: memref<8x1xf32, #tpu.memory_space<vmem>>, %arg13: memref<16x1xf32, #tpu.memory_space<vmem>>, %arg14: memref<1x24x256xf32, #tpu.memory_space<vmem>>, %arg15: memref<1x24x256xf32, #tpu.memory_space<vmem>>) attributes {dimension_semantics = [#tpu.dimension_semantics<parallel>, #tpu.dimension_semantics<parallel>], iteration_bounds = array<i64: 2, 1>, scalar_prefetch = 0 : i64, scratch_operands = 0 : i64, tpu.core_type = #tpu.core_type<tc>, window_params = [{transform_indices = @transform_0, window_bounds = array<i64: 1, 4, 256>}, {transform_indices = @transform_1, window_bounds = array<i64: 1, 8, 256>}, {transform_indices = @transform_2, window_bounds = array<i64: 1, 4, 256>}, {transform_indices = @transform_3, window_bounds = array<i64: 1, 8, 256>}, {pipeline_mode = #tpu.pipeline_mode<synchronous>, transform_indices = @transform_4, window_bounds = array<i64: 8, 4>}, {pipeline_mode = #tpu.pipeline_mode<synchronous>, transform_indices = @transform_5, window_bounds = array<i64: 16, 8>}, {pipeline_mode = #tpu.pipeline_mode<synchronous>, transform_indices = @transform_6, window_bounds = array<i64: 8, 1>}, {pipeline_mode = #tpu.pipeline_mode<synchronous>, transform_indices = @transform_7, window_bounds = array<i64: 16, 1>}, {pipeline_mode = #tpu.pipeline_mode<synchronous>, transform_indices = @transform_8, window_bounds = array<i64: 8, 4>}, {pipeline_mode = #tpu.pipeline_mode<synchronous>, transform_indices = @transform_9, window_bounds = array<i64: 16, 8>}, {pipeline_mode = #tpu.pipeline_mode<synchronous>, transform_indices = @transform_10, window_bounds = array<i64: 8, 1>}, {pipeline_mode = #tpu.pipeline_mode<synchronous>, transform_indices = @transform_11, window_bounds = array<i64: 16, 1>}, {transform_indices = @transform_12, window_bounds = array<i64: 1, 24, 256>}, {transform_indices = @transform_13, window_bounds = array<i64: 1, 24, 256>}]} {
    %c0 = arith.constant 0 : index
    %c0_0 = arith.constant 0 : index
    %0 = vector.load %arg6[%c0, %c0_0] : memref<8x4xf32, #tpu.memory_space<vmem>>, vector<8x4xf32>
    %c0_1 = arith.constant 0 : index
    %c0_2 = arith.constant 0 : index
    %c0_3 = arith.constant 0 : index
    %1 = vector.load %arg2[%c0_1, %c0_2, %c0_3] : memref<1x4x256xf32, #tpu.memory_space<vmem>>, vector<1x4x256xf32>
    %2 = vector.shape_cast %1 : vector<1x4x256xf32> to vector<4x256xf32>
    %cst = arith.constant dense<0.000000e+00> : vector<8x256xf32>
    %3 = tpu.matmul %0, %2, %cst {dimension_numbers = #tpu.dot_dimension_numbers<[1], [0], [0], [1], [0, 0, 1, 1], [], []>} : vector<8x4xf32>, vector<4x256xf32>, vector<8x256xf32> -> vector<8x256xf32>
    %c0_4 = arith.constant 0 : index
    %c0_5 = arith.constant 0 : index
    %4 = vector.load %arg8[%c0_4, %c0_5] : memref<8x1xf32, #tpu.memory_space<vmem>>, vector<8x1xf32>
    %5 = vector.broadcast %4 : vector<8x1xf32> to vector<8x256xf32>
    %6 = arith.addf %3, %5 : vector<8x256xf32>
    %cst_6 = arith.constant 0.000000e+00 : f32
    %7 = vector.broadcast %cst_6 : f32 to vector<8x256xf32>
    %8 = arith.maximumf %6, %7 : vector<8x256xf32>
    %c0_7 = arith.constant 0 : index
    %c0_8 = arith.constant 0 : index
    %9 = vector.load %arg10[%c0_7, %c0_8] : memref<8x4xf32, #tpu.memory_space<vmem>>, vector<8x4xf32>
    %c0_9 = arith.constant 0 : index
    %c0_10 = arith.constant 0 : index
    %c0_11 = arith.constant 0 : index
    %10 = vector.load %arg4[%c0_9, %c0_10, %c0_11] : memref<1x4x256xf32, #tpu.memory_space<vmem>>, vector<1x4x256xf32>
    %11 = vector.shape_cast %10 : vector<1x4x256xf32> to vector<4x256xf32>
    %cst_12 = arith.constant dense<0.000000e+00> : vector<8x256xf32>
    %12 = tpu.matmul %9, %11, %cst_12 {dimension_numbers = #tpu.dot_dimension_numbers<[1], [0], [0], [1], [0, 0, 1, 1], [], []>} : vector<8x4xf32>, vector<4x256xf32>, vector<8x256xf32> -> vector<8x256xf32>
    %c0_13 = arith.constant 0 : index
    %c0_14 = arith.constant 0 : index
    %13 = vector.load %arg12[%c0_13, %c0_14] : memref<8x1xf32, #tpu.memory_space<vmem>>, vector<8x1xf32>
    %14 = vector.broadcast %13 : vector<8x1xf32> to vector<8x256xf32>
    %15 = arith.addf %12, %14 : vector<8x256xf32>
    %cst_15 = arith.constant 0.000000e+00 : f32
    %16 = vector.broadcast %cst_15 : f32 to vector<8x256xf32>
    %17 = arith.maximumf %15, %16 : vector<8x256xf32>
    %c0_16 = arith.constant 0 : index
    %c0_17 = arith.constant 0 : index
    %18 = vector.load %arg7[%c0_16, %c0_17] : memref<16x8xf32, #tpu.memory_space<vmem>>, vector<16x8xf32>
    %c0_18 = arith.constant 0 : index
    %c0_19 = arith.constant 0 : index
    %c0_20 = arith.constant 0 : index
    %19 = vector.load %arg3[%c0_18, %c0_19, %c0_20] : memref<1x8x256xf32, #tpu.memory_space<vmem>>, vector<1x8x256xf32>
    %20 = vector.shape_cast %19 : vector<1x8x256xf32> to vector<8x256xf32>
    %cst_21 = arith.constant dense<0.000000e+00> : vector<16x256xf32>
    %21 = tpu.matmul %18, %20, %cst_21 {dimension_numbers = #tpu.dot_dimension_numbers<[1], [0], [0], [1], [0, 0, 1, 1], [], []>} : vector<16x8xf32>, vector<8x256xf32>, vector<16x256xf32> -> vector<16x256xf32>
    %c0_22 = arith.constant 0 : index
    %c0_23 = arith.constant 0 : index
    %22 = vector.load %arg9[%c0_22, %c0_23] : memref<16x1xf32, #tpu.memory_space<vmem>>, vector<16x1xf32>
    %23 = vector.broadcast %22 : vector<16x1xf32> to vector<16x256xf32>
    %24 = arith.addf %21, %23 : vector<16x256xf32>
    %cst_24 = arith.constant 0.000000e+00 : f32
    %25 = vector.broadcast %cst_24 : f32 to vector<16x256xf32>
    %26 = arith.maximumf %24, %25 : vector<16x256xf32>
    %c0_25 = arith.constant 0 : index
    %c0_26 = arith.constant 0 : index
    %27 = vector.load %arg11[%c0_25, %c0_26] : memref<16x8xf32, #tpu.memory_space<vmem>>, vector<16x8xf32>
    %c0_27 = arith.constant 0 : index
    %c0_28 = arith.constant 0 : index
    %c0_29 = arith.constant 0 : index
    %28 = vector.load %arg5[%c0_27, %c0_28, %c0_29] : memref<1x8x256xf32, #tpu.memory_space<vmem>>, vector<1x8x256xf32>
    %29 = vector.shape_cast %28 : vector<1x8x256xf32> to vector<8x256xf32>
    %cst_30 = arith.constant dense<0.000000e+00> : vector<16x256xf32>
    %30 = tpu.matmul %27, %29, %cst_30 {dimension_numbers = #tpu.dot_dimension_numbers<[1], [0], [0], [1], [0, 0, 1, 1], [], []>} : vector<16x8xf32>, vector<8x256xf32>, vector<16x256xf32> -> vector<16x256xf32>
    %c0_31 = arith.constant 0 : index
    %c0_32 = arith.constant 0 : index
    %31 = vector.load %arg13[%c0_31, %c0_32] : memref<16x1xf32, #tpu.memory_space<vmem>>, vector<16x1xf32>
    %32 = vector.broadcast %31 : vector<16x1xf32> to vector<16x256xf32>
    %33 = arith.addf %30, %32 : vector<16x256xf32>
    %cst_33 = arith.constant 0.000000e+00 : f32
    %34 = vector.broadcast %cst_33 : f32 to vector<16x256xf32>
    %35 = arith.maximumf %33, %34 : vector<16x256xf32>
    %36 = tpu.concatenate %8, %26 in 0 : vector<8x256xf32>, vector<16x256xf32> -> vector<24x256xf32>
    %c0_34 = arith.constant 0 : index
    %c0_35 = arith.constant 0 : index
    %c0_36 = arith.constant 0 : index
    %37 = vector.load %arg14[%c0_34, %c0_35, %c0_36] : memref<1x24x256xf32, #tpu.memory_space<vmem>>, vector<1x24x256xf32>
    %38 = vector.shape_cast %37 : vector<1x24x256xf32> to vector<24x256xf32>
    %39 = vector.shape_cast %36 : vector<24x256xf32> to vector<1x24x256xf32>
    tpu.vector_store %arg14[%c0_34, %c0_35, %c0_36], %39 {strides = array<i32>} : memref<1x24x256xf32, #tpu.memory_space<vmem>>, vector<1x24x256xf32>,
    %40 = tpu.concatenate %17, %35 in 0 : vector<8x256xf32>, vector<16x256xf32> -> vector<24x256xf32>
    %c0_37 = arith.constant 0 : index
    %c0_38 = arith.constant 0 : index
    %c0_39 = arith.constant 0 : index
    %41 = vector.load %arg15[%c0_37, %c0_38, %c0_39] : memref<1x24x256xf32, #tpu.memory_space<vmem>>, vector<1x24x256xf32>
    %42 = vector.shape_cast %41 : vector<1x24x256xf32> to vector<24x256xf32>
    %43 = vector.shape_cast %40 : vector<24x256xf32> to vector<1x24x256xf32>
    tpu.vector_store %arg15[%c0_37, %c0_38, %c0_39], %43 {strides = array<i32>} : memref<1x24x256xf32, #tpu.memory_space<vmem>>, vector<1x24x256xf32>,
    return
  }
  func.func @transform_0(%arg0: i32, %arg1: i32) -> (i32, i32, i32) {
    %c0_i32 = arith.constant 0 : i32
    %c0_i32_0 = arith.constant 0 : i32
    return %arg0, %c0_i32, %arg1 : i32, i32, i32
  }
  func.func @transform_1(%arg0: i32, %arg1: i32) -> (i32, i32, i32) {
    %c0_i32 = arith.constant 0 : i32
    %c0_i32_0 = arith.constant 0 : i32
    return %arg0, %c0_i32, %arg1 : i32, i32, i32
  }
  func.func @transform_2(%arg0: i32, %arg1: i32) -> (i32, i32, i32) {
    %c0_i32 = arith.constant 0 : i32
    %c0_i32_0 = arith.constant 0 : i32
    return %arg0, %c0_i32, %arg1 : i32, i32, i32
  }
  func.func @transform_3(%arg0: i32, %arg1: i32) -> (i32, i32, i32) {
    %c0_i32 = arith.constant 0 : i32
    %c0_i32_0 = arith.constant 0 : i32
    return %arg0, %c0_i32, %arg1 : i32, i32, i32
  }
  func.func @transform_4(%arg0: i32, %arg1: i32) -> (i32, i32) {
    %c0_i32 = arith.constant 0 : i32
    %c0_i32_0 = arith.constant 0 : i32
    %c0_i32_1 = arith.constant 0 : i32
    return %c0_i32, %c0_i32_0 : i32, i32
  }
  func.func @transform_5(%arg0: i32, %arg1: i32) -> (i32, i32) {
    %c0_i32 = arith.constant 0 : i32
    %c0_i32_0 = arith.constant 0 : i32
    %c0_i32_1 = arith.constant 0 : i32
    return %c0_i32, %c0_i32_0 : i32, i32
  }
  func.func @transform_6(%arg0: i32, %arg1: i32) -> (i32, i32) {
    %c0_i32 = arith.constant 0 : i32
    %c0_i32_0 = arith.constant 0 : i32
    %c0_i32_1 = arith.constant 0 : i32
    return %c0_i32, %c0_i32_0 : i32, i32
  }
  func.func @transform_7(%arg0: i32, %arg1: i32) -> (i32, i32) {
    %c0_i32 = arith.constant 0 : i32
    %c0_i32_0 = arith.constant 0 : i32
    %c0_i32_1 = arith.constant 0 : i32
    return %c0_i32, %c0_i32_0 : i32, i32
  }
  func.func @transform_8(%arg0: i32, %arg1: i32) -> (i32, i32) {
    %c0_i32 = arith.constant 0 : i32
    %c0_i32_0 = arith.constant 0 : i32
    %c0_i32_1 = arith.constant 0 : i32
    return %c0_i32, %c0_i32_0 : i32, i32
  }
  func.func @transform_9(%arg0: i32, %arg1: i32) -> (i32, i32) {
    %c0_i32 = arith.constant 0 : i32
    %c0_i32_0 = arith.constant 0 : i32
    %c0_i32_1 = arith.constant 0 : i32
    return %c0_i32, %c0_i32_0 : i32, i32
  }
  func.func @transform_10(%arg0: i32, %arg1: i32) -> (i32, i32) {
    %c0_i32 = arith.constant 0 : i32
    %c0_i32_0 = arith.constant 0 : i32
    %c0_i32_1 = arith.constant 0 : i32
    return %c0_i32, %c0_i32_0 : i32, i32
  }
  func.func @transform_11(%arg0: i32, %arg1: i32) -> (i32, i32) {
    %c0_i32 = arith.constant 0 : i32
    %c0_i32_0 = arith.constant 0 : i32
    %c0_i32_1 = arith.constant 0 : i32
    return %c0_i32, %c0_i32_0 : i32, i32
  }
  func.func @transform_12(%arg0: i32, %arg1: i32) -> (i32, i32, i32) {
    %c0_i32 = arith.constant 0 : i32
    %c0_i32_0 = arith.constant 0 : i32
    return %arg0, %c0_i32, %arg1 : i32, i32, i32
  }
  func.func @transform_13(%arg0: i32, %arg1: i32) -> (i32, i32, i32) {
    %c0_i32 = arith.constant 0 : i32
    %c0_i32_0 = arith.constant 0 : i32
    return %arg0, %c0_i32, %arg1 : i32, i32, i32
  }
}

</mosaic_0001>

<llo_original>
// kernel: tpu_custom_call.1
$region0: #{tpu_custom_call.1}
  #allocation0 [shape = 'u32[]', space=smem, size = 0x4, offset = 0x4, fixed_abs, tag = 'smem constant byte address 0x4 - core index']
  #allocation1 [shape = 'u32[72,128]{1,0:T(1,128)}', space=vmem, size = 0x9000, scoped, tag = 'internal scratch']
  %s0 = inlined_call_operand.vmem [shape: f32[2,4,256], index: 0, kind: input, shape index: {}]
  %s1 = inlined_call_operand.vmem [shape: f32[2,8,256], index: 1, kind: input, shape index: {}]
  %s2 = inlined_call_operand.vmem [shape: f32[2,4,256], index: 2, kind: input, shape index: {}]
  %s3 = inlined_call_operand.vmem [shape: f32[2,8,256], index: 3, kind: input, shape index: {}]
  %s4 = inlined_call_operand.vmem [shape: f32[8,4], index: 4, kind: input, shape index: {}]
  %s5 = inlined_call_operand.vmem [shape: f32[16,8], index: 5, kind: input, shape index: {}]
  %s6 = inlined_call_operand.vmem [shape: f32[8,1], index: 6, kind: input, shape index: {}]
  %s7 = inlined_call_operand.vmem [shape: f32[16,1], index: 7, kind: input, shape index: {}]
  %s8 = inlined_call_operand.vmem [shape: f32[8,4], index: 8, kind: input, shape index: {}]
  %s9 = inlined_call_operand.vmem [shape: f32[16,8], index: 9, kind: input, shape index: {}]
  %s10 = inlined_call_operand.vmem [shape: f32[8,1], index: 10, kind: input, shape index: {}]
  %s11 = inlined_call_operand.vmem [shape: f32[16,1], index: 11, kind: input, shape index: {}]
  %s12 = inlined_call_operand.hbm [shape: f32[2,24,256], index: 12, kind: output, shape index: {0}]
  %s13 = inlined_call_operand.hbm [shape: f32[2,24,256], index: 13, kind: output, shape index: {1}]
  %14 = xla_tuple %s12, %s13
  %s15 = sld [smem:[#allocation0]]
  $region89: #{tpu_custom_call.1} parent=0
    _
  %s17 = ssub.s32 1, %s15
  %s18 = scalar_select 0, %s17, %s15
  $region1: #{tpu_custom_call.1} parent=0
    #allocation2 [shape = 'u8[49152]{0}', space=vmem, size = 0xc000, scoped, tag = 'output window, operand 0']
    #allocation3 [shape = 's32[2]{0}', space=sflag, size = 0x8, scoped, tag = 'scoped memory for tpu_custom_call.1']
    #allocation4 [shape = 'u8[49152]{0}', space=vmem, size = 0xc000, scoped, tag = 'output window, operand 1']
    #allocation5 [shape = 's32[2]{0}', space=sflag, size = 0x8, scoped, tag = 'scoped memory for tpu_custom_call.1']
    %19 = vsyncpa [#allocation3], 0
    %s20 = scalar_lea.sflag [#allocation3], 1
    %21 = vsyncpa %s20, 0
    %22 = vsyncpa [#allocation5], 0
    %s23 = scalar_lea.sflag [#allocation5], 1
    %24 = vsyncpa %s23, 0
    loop: start=0, step=1, limit=4
    $region2: #{tpu_custom_call.1} parent=1 // loop_pre_header
      _
    $region3: #{tpu_custom_call.1} parent=1 // loop_header
      %s26 = sphi 0, %s30
      %p27 = scmp.ge.s32.totalorder %s26, 4
      %s33 = sphi 0, %s45
      %s34 = sphi 0, %s41
      %s35 = sphi 0, %s33
      %s36 = sphi 0, %s34
      %s37 = sphi 0, %s35
      %s38 = sphi 0, %s36
      %s50 = sphi 0, %s52
      %s53 = sphi 0, %s50
      %s54 = sphi 0, %s53
      %s70 = sphi 0, %s54
      %s78 = sphi 0, %s80
      %s81 = sphi 0, %s78
      %s82 = sphi 0, %s81
      %s98 = sphi 0, %s82
      %s106 = sphi 0, %s108
      %s109 = sphi 0, %s106
      %s110 = sphi 0, %s109
      %s126 = sphi 0, %s110
      %s134 = sphi 0, %s136
      %s137 = sphi 0, %s134
      %s138 = sphi 0, %s137
      %s154 = sphi 0, %s138
      %s158 = sphi 0, %s158
      %s160 = sphi 0, %s158
      %s161 = sphi 0, %s160
      %s175 = sphi 0, %s161
      %s179 = sphi 0, %s179
      %s181 = sphi 0, %s179
      %s182 = sphi 0, %s181
      %s196 = sphi 0, %s182
      %s200 = sphi 0, %s200
      %s202 = sphi 0, %s200
      %s203 = sphi 0, %s202
      %s217 = sphi 0, %s203
      %s221 = sphi 0, %s221
      %s223 = sphi 0, %s221
      %s224 = sphi 0, %s223
      %s238 = sphi 0, %s224
      %s242 = sphi 0, %s242
      %s244 = sphi 0, %s242
      %s245 = sphi 0, %s244
      %s259 = sphi 0, %s245
      %s263 = sphi 0, %s263
      %s265 = sphi 0, %s263
      %s266 = sphi 0, %s265
      %s280 = sphi 0, %s266
      %s284 = sphi 0, %s284
      %s286 = sphi 0, %s284
      %s287 = sphi 0, %s286
      %s301 = sphi 0, %s287
      %s305 = sphi 0, %s305
      %s307 = sphi 0, %s305
      %s308 = sphi 0, %s307
      %s322 = sphi 0, %s308
      %s330 = sphi 0, %s332
      %s333 = sphi 0, %s330
      %s334 = sphi 0, %s333
      %s350 = sphi 0, %s334
      %s358 = sphi 0, %s360
      %s361 = sphi 0, %s358
      %s362 = sphi 0, %s361
      %s378 = sphi 0, %s362
    $region4: #{tpu_custom_call.1} parent=1 // loop_header_branch
      %29 = sbr.rel (%p27) target = $region8
    $region5: #{tpu_custom_call.1} parent=1 // loop_body
      %s31 = ssub.s32 %s26, 1
      %s32 = ssub.s32 %s26, 2
      %s39 = sadd.s32 1, %s34
      %p40 = scmp.ge.s32.totalorder %s39, 1
      %s41 = scalar_select %p40, 0, %s39
      %s42 = sadd.s32 1, %s33
      %s43 = scalar_select %p40, %s42, %s33
      %p44 = scmp.ge.s32.totalorder %s43, 2
      %s45 = scalar_select %p44, 0, %s43
      %s46 = ssub.s32 %s33, %s45
      %s47 = ssub.s32 %s34, %s41
      %s48 = sor.u32 %s46, %s47
      %p49 = scmp.eq.s32.totalorder %s48, 0
      %s51 = sadd.s32 %s50, 1
      %s52 = scalar_select %p49, %s50, %s51
      %p55 = pneg %p49
      %p56 = scmp.eq.s32.totalorder %s26, 1
      %p57 = por %p55, %p56
      %p58 = scmp.ne.s32.totalorder %s50, %s53
      %p59 = scmp.eq.s32.totalorder %s26, 0
      %p60 = por %p58, %p59
      %p61 = scmp.ne.s32.totalorder %s50, %s53
      %p62 = scmp.eq.s32.totalorder %s31, 1
      %p63 = por %p61, %p62
      %p64 = scmp.ne.s32.totalorder %s53, %s54
      %p65 = scmp.eq.s32.totalorder %s31, 0
      %p66 = por %p64, %p65
      %p67 = scmp.ne.s32.totalorder %s53, %s54
      %p68 = scmp.eq.s32.totalorder %s32, 1
      %p69 = por %p67, %p68
      %p71 = scmp.ne.s32.totalorder %s54, %s70
      %p72 = scmp.eq.s32.totalorder %s32, 0
      %p73 = por %p71, %p72
      %s74 = ssub.s32 %s33, %s45
      %s75 = ssub.s32 %s34, %s41
      %s76 = sor.u32 %s74, %s75
      %p77 = scmp.eq.s32.totalorder %s76, 0
      %s79 = sadd.s32 %s78, 1
      %s80 = scalar_select %p77, %s78, %s79
      %p83 = pneg %p77
      %p84 = scmp.eq.s32.totalorder %s26, 1
      %p85 = por %p83, %p84
      %p86 = scmp.ne.s32.totalorder %s78, %s81
      %p87 = scmp.eq.s32.totalorder %s26, 0
      %p88 = por %p86, %p87
      %p89 = scmp.ne.s32.totalorder %s78, %s81
      %p90 = scmp.eq.s32.totalorder %s31, 1
      %p91 = por %p89, %p90
      %p92 = scmp.ne.s32.totalorder %s81, %s82
      %p93 = scmp.eq.s32.totalorder %s31, 0
      %p94 = por %p92, %p93
      %p95 = scmp.ne.s32.totalorder %s81, %s82
      %p96 = scmp.eq.s32.totalorder %s32, 1
      %p97 = por %p95, %p96
      %p99 = scmp.ne.s32.totalorder %s82, %s98
      %p100 = scmp.eq.s32.totalorder %s32, 0
      %p101 = por %p99, %p100
      %s102 = ssub.s32 %s33, %s45
      %s103 = ssub.s32 %s34, %s41
      %s104 = sor.u32 %s102, %s103
      %p105 = scmp.eq.s32.totalorder %s104, 0
      %s107 = sadd.s32 %s106, 1
      %s108 = scalar_select %p105, %s106, %s107
      %p111 = pneg %p105
      %p112 = scmp.eq.s32.totalorder %s26, 1
      %p113 = por %p111, %p112
      %p114 = scmp.ne.s32.totalorder %s106, %s109
      %p115 = scmp.eq.s32.totalorder %s26, 0
      %p116 = por %p114, %p115
      %p117 = scmp.ne.s32.totalorder %s106, %s109
      %p118 = scmp.eq.s32.totalorder %s31, 1
      %p119 = por %p117, %p118
      %p120 = scmp.ne.s32.totalorder %s109, %s110
      %p121 = scmp.eq.s32.totalorder %s31, 0
      %p122 = por %p120, %p121
      %p123 = scmp.ne.s32.totalorder %s109, %s110
      %p124 = scmp.eq.s32.totalorder %s32, 1
      %p125 = por %p123, %p124
      %p127 = scmp.ne.s32.totalorder %s110, %s126
      %p128 = scmp.eq.s32.totalorder %s32, 0
      %p129 = por %p127, %p128
      %s130 = ssub.s32 %s33, %s45
      %s131 = ssub.s32 %s34, %s41
      %s132 = sor.u32 %s130, %s131
      %p133 = scmp.eq.s32.totalorder %s132, 0
      %s135 = sadd.s32 %s134, 1
      %s136 = scalar_select %p133, %s134, %s135
      %p139 = pneg %p133
      %p140 = scmp.eq.s32.totalorder %s26, 1
      %p141 = por %p139, %p140
      %p142 = scmp.ne.s32.totalorder %s134, %s137
      %p143 = scmp.eq.s32.totalorder %s26, 0
      %p144 = por %p142, %p143
      %p145 = scmp.ne.s32.totalorder %s134, %s137
      %p146 = scmp.eq.s32.totalorder %s31, 1
      %p147 = por %p145, %p146
      %p148 = scmp.ne.s32.totalorder %s137, %s138
      %p149 = scmp.eq.s32.totalorder %s31, 0
      %p150 = por %p148, %p149
      %p151 = scmp.ne.s32.totalorder %s137, %s138
      %p152 = scmp.eq.s32.totalorder %s32, 1
      %p153 = por %p151, %p152
      %p155 = scmp.ne.s32.totalorder %s138, %s154
      %p156 = scmp.eq.s32.totalorder %s32, 0
      %p157 = por %p155, %p156
      %s159 = sadd.s32 %s158, 1
      %p162 = scmp.eq.s32.totalorder %s26, 1
      %p163 = scmp.ne.s32.totalorder %s158, %s160
      %p164 = scmp.eq.s32.totalorder %s26, 0
      %p165 = por %p163, %p164
      %p166 = scmp.ne.s32.totalorder %s158, %s160
      %p167 = scmp.eq.s32.totalorder %s31, 1
      %p168 = por %p166, %p167
      %p169 = scmp.ne.s32.totalorder %s160, %s161
      %p170 = scmp.eq.s32.totalorder %s31, 0
      %p171 = por %p169, %p170
      %p172 = scmp.ne.s32.totalorder %s160, %s161
      %p173 = scmp.eq.s32.totalorder %s32, 1
      %p174 = por %p172, %p173
      %p176 = scmp.ne.s32.totalorder %s161, %s175
      %p177 = scmp.eq.s32.totalorder %s32, 0
      %p178 = por %p176, %p177
      %s180 = sadd.s32 %s179, 1
      %p183 = scmp.eq.s32.totalorder %s26, 1
      %p184 = scmp.ne.s32.totalorder %s179, %s181
      %p185 = scmp.eq.s32.totalorder %s26, 0
      %p186 = por %p184, %p185
      %p187 = scmp.ne.s32.totalorder %s179, %s181
      %p188 = scmp.eq.s32.totalorder %s31, 1
      %p189 = por %p187, %p188
      %p190 = scmp.ne.s32.totalorder %s181, %s182
      %p191 = scmp.eq.s32.totalorder %s31, 0
      %p192 = por %p190, %p191
      %p193 = scmp.ne.s32.totalorder %s181, %s182
      %p194 = scmp.eq.s32.totalorder %s32, 1
      %p195 = por %p193, %p194
      %p197 = scmp.ne.s32.totalorder %s182, %s196
      %p198 = scmp.eq.s32.totalorder %s32, 0
      %p199 = por %p197, %p198
      %s201 = sadd.s32 %s200, 1
      %p204 = scmp.eq.s32.totalorder %s26, 1
      %p205 = scmp.ne.s32.totalorder %s200, %s202
      %p206 = scmp.eq.s32.totalorder %s26, 0
      %p207 = por %p205, %p206
      %p208 = scmp.ne.s32.totalorder %s200, %s202
      %p209 = scmp.eq.s32.totalorder %s31, 1
      %p210 = por %p208, %p209
      %p211 = scmp.ne.s32.totalorder %s202, %s203
      %p212 = scmp.eq.s32.totalorder %s31, 0
      %p213 = por %p211, %p212
      %p214 = scmp.ne.s32.totalorder %s202, %s203
      %p215 = scmp.eq.s32.totalorder %s32, 1
      %p216 = por %p214, %p215
      %p218 = scmp.ne.s32.totalorder %s203, %s217
      %p219 = scmp.eq.s32.totalorder %s32, 0
      %p220 = por %p218, %p219
      %s222 = sadd.s32 %s221, 1
      %p225 = scmp.eq.s32.totalorder %s26, 1
      %p226 = scmp.ne.s32.totalorder %s221, %s223
      %p227 = scmp.eq.s32.totalorder %s26, 0
      %p228 = por %p226, %p227
      %p229 = scmp.ne.s32.totalorder %s221, %s223
      %p230 = scmp.eq.s32.totalorder %s31, 1
      %p231 = por %p229, %p230
      %p232 = scmp.ne.s32.totalorder %s223, %s224
      %p233 = scmp.eq.s32.totalorder %s31, 0
      %p234 = por %p232, %p233
      %p235 = scmp.ne.s32.totalorder %s223, %s224
      %p236 = scmp.eq.s32.totalorder %s32, 1
      %p237 = por %p235, %p236
      %p239 = scmp.ne.s32.totalorder %s224, %s238
      %p240 = scmp.eq.s32.totalorder %s32, 0
      %p241 = por %p239, %p240
      %s243 = sadd.s32 %s242, 1
      %p246 = scmp.eq.s32.totalorder %s26, 1
      %p247 = scmp.ne.s32.totalorder %s242, %s244
      %p248 = scmp.eq.s32.totalorder %s26, 0
      %p249 = por %p247, %p248
      %p250 = scmp.ne.s32.totalorder %s242, %s244
      %p251 = scmp.eq.s32.totalorder %s31, 1
      %p252 = por %p250, %p251
      %p253 = scmp.ne.s32.totalorder %s244, %s245
      %p254 = scmp.eq.s32.totalorder %s31, 0
      %p255 = por %p253, %p254
      %p256 = scmp.ne.s32.totalorder %s244, %s245
      %p257 = scmp.eq.s32.totalorder %s32, 1
      %p258 = por %p256, %p257
      %p260 = scmp.ne.s32.totalorder %s245, %s259
      %p261 = scmp.eq.s32.totalorder %s32, 0
      %p262 = por %p260, %p261
      %s264 = sadd.s32 %s263, 1
      %p267 = scmp.eq.s32.totalorder %s26, 1
      %p268 = scmp.ne.s32.totalorder %s263, %s265
      %p269 = scmp.eq.s32.totalorder %s26, 0
      %p270 = por %p268, %p269
      %p271 = scmp.ne.s32.totalorder %s263, %s265
      %p272 = scmp.eq.s32.totalorder %s31, 1
      %p273 = por %p271, %p272
      %p274 = scmp.ne.s32.totalorder %s265, %s266
      %p275 = scmp.eq.s32.totalorder %s31, 0
      %p276 = por %p274, %p275
      %p277 = scmp.ne.s32.totalorder %s265, %s266
      %p278 = scmp.eq.s32.totalorder %s32, 1
      %p279 = por %p277, %p278
      %p281 = scmp.ne.s32.totalorder %s266, %s280
      %p282 = scmp.eq.s32.totalorder %s32, 0
      %p283 = por %p281, %p282
      %s285 = sadd.s32 %s284, 1
      %p288 = scmp.eq.s32.totalorder %s26, 1
      %p289 = scmp.ne.s32.totalorder %s284, %s286
      %p290 = scmp.eq.s32.totalorder %s26, 0
      %p291 = por %p289, %p290
      %p292 = scmp.ne.s32.totalorder %s284, %s286
      %p293 = scmp.eq.s32.totalorder %s31, 1
      %p294 = por %p292, %p293
      %p295 = scmp.ne.s32.totalorder %s286, %s287
      %p296 = scmp.eq.s32.totalorder %s31, 0
      %p297 = por %p295, %p296
      %p298 = scmp.ne.s32.totalorder %s286, %s287
      %p299 = scmp.eq.s32.totalorder %s32, 1
      %p300 = por %p298, %p299
      %p302 = scmp.ne.s32.totalorder %s287, %s301
      %p303 = scmp.eq.s32.totalorder %s32, 0
      %p304 = por %p302, %p303
      %s306 = sadd.s32 %s305, 1
      %p309 = scmp.eq.s32.totalorder %s26, 1
      %p310 = scmp.ne.s32.totalorder %s305, %s307
      %p311 = scmp.eq.s32.totalorder %s26, 0
      %p312 = por %p310, %p311
      %p313 = scmp.ne.s32.totalorder %s305, %s307
      %p314 = scmp.eq.s32.totalorder %s31, 1
      %p315 = por %p313, %p314
      %p316 = scmp.ne.s32.totalorder %s307, %s308
      %p317 = scmp.eq.s32.totalorder %s31, 0
      %p318 = por %p316, %p317
      %p319 = scmp.ne.s32.totalorder %s307, %s308
      %p320 = scmp.eq.s32.totalorder %s32, 1
      %p321 = por %p319, %p320
      %p323 = scmp.ne.s32.totalorder %s308, %s322
      %p324 = scmp.eq.s32.totalorder %s32, 0
      %p325 = por %p323, %p324
      %s326 = ssub.s32 %s33, %s45
      %s327 = ssub.s32 %s34, %s41
      %s328 = sor.u32 %s326, %s327
      %p329 = scmp.eq.s32.totalorder %s328, 0
      %s331 = sadd.s32 %s330, 1
      %s332 = scalar_select %p329, %s330, %s331
      %p335 = pneg %p329
      %p336 = scmp.eq.s32.totalorder %s26, 1
      %p337 = por %p335, %p336
      %p338 = scmp.ne.s32.totalorder %s330, %s333
      %p339 = scmp.eq.s32.totalorder %s26, 0
      %p340 = por %p338, %p339
      %p341 = scmp.ne.s32.totalorder %s330, %s333
      %p342 = scmp.eq.s32.totalorder %s31, 1
      %p343 = por %p341, %p342
      %p344 = scmp.ne.s32.totalorder %s333, %s334
      %p345 = scmp.eq.s32.totalorder %s31, 0
      %p346 = por %p344, %p345
      %p347 = scmp.ne.s32.totalorder %s333, %s334
      %p348 = scmp.eq.s32.totalorder %s32, 1
      %p349 = por %p347, %p348
      %p351 = scmp.ne.s32.totalorder %s334, %s350
      %p352 = scmp.eq.s32.totalorder %s32, 0
      %p353 = por %p351, %p352
      %s354 = ssub.s32 %s33, %s45
      %s355 = ssub.s32 %s34, %s41
      %s356 = sor.u32 %s354, %s355
      %p357 = scmp.eq.s32.totalorder %s356, 0
      %s359 = sadd.s32 %s358, 1
      %s360 = scalar_select %p357, %s358, %s359
      %p363 = pneg %p357
      %p364 = scmp.eq.s32.totalorder %s26, 1
      %p365 = por %p363, %p364
      %p366 = scmp.ne.s32.totalorder %s358, %s361
      %p367 = scmp.eq.s32.totalorder %s26, 0
      %p368 = por %p366, %p367
      %p369 = scmp.ne.s32.totalorder %s358, %s361
      %p370 = scmp.eq.s32.totalorder %s31, 1
      %p371 = por %p369, %p370
      %p372 = scmp.ne.s32.totalorder %s361, %s362
      %p373 = scmp.eq.s32.totalorder %s31, 0
      %p374 = por %p372, %p373
      %p375 = scmp.ne.s32.totalorder %s361, %s362
      %p376 = scmp.eq.s32.totalorder %s32, 1
      %p377 = por %p375, %p376
      %p379 = scmp.ne.s32.totalorder %s362, %s378
      %p380 = scmp.eq.s32.totalorder %s32, 0
      %p381 = por %p379, %p380
      %p382 = scmp.le.s32.totalorder 1, %s26
      %p383 = scmp.lt.s32.totalorder %s26, 3
      %p384 = pnand %p382, %p383
      %p385 = pneg %p384
      // Predicated region
      $region9: #{tpu_custom_call.1} parent=5 // pred_check
        _
      $region10: #{tpu_custom_call.1} parent=5 // pred_check_branch
        %387 = sbr.rel (%p384) target = $region12
      $region11: #{tpu_custom_call.1} parent=5 // pred_region
        %s388 = ssub.s32 %s26, 1
        // Predicated region
        $region13: #{tpu_custom_call.1} parent=11 // pred_check
          %p389 = pneg %p171
        $region14: #{tpu_custom_call.1} parent=11 // pred_check_branch
          %391 = sbr.rel (%p389) target = $region16
        $region15: #{tpu_custom_call.1} parent=11 // pred_region
          _
        $region16: #{tpu_custom_call.1} parent=11 // pred_fallthru
          _
        // Predicated region
        $region17: #{tpu_custom_call.1} parent=11 // pred_check
          %p392 = pneg %p192
        $region18: #{tpu_custom_call.1} parent=11 // pred_check_branch
          %394 = sbr.rel (%p392) target = $region20
        $region19: #{tpu_custom_call.1} parent=11 // pred_region
          _
        $region20: #{tpu_custom_call.1} parent=11 // pred_fallthru
          _
        // Predicated region
        $region21: #{tpu_custom_call.1} parent=11 // pred_check
          %p395 = pneg %p213
        $region22: #{tpu_custom_call.1} parent=11 // pred_check_branch
          %397 = sbr.rel (%p395) target = $region24
        $region23: #{tpu_custom_call.1} parent=11 // pred_region
          _
        $region24: #{tpu_custom_call.1} parent=11 // pred_fallthru
          _
        // Predicated region
        $region25: #{tpu_custom_call.1} parent=11 // pred_check
          %p398 = pneg %p234
        $region26: #{tpu_custom_call.1} parent=11 // pred_check_branch
          %400 = sbr.rel (%p398) target = $region28
        $region27: #{tpu_custom_call.1} parent=11 // pred_region
          _
        $region28: #{tpu_custom_call.1} parent=11 // pred_fallthru
          _
        // Predicated region
        $region29: #{tpu_custom_call.1} parent=11 // pred_check
          %p401 = pneg %p255
        $region30: #{tpu_custom_call.1} parent=11 // pred_check_branch
          %403 = sbr.rel (%p401) target = $region32
        $region31: #{tpu_custom_call.1} parent=11 // pred_region
          _
        $region32: #{tpu_custom_call.1} parent=11 // pred_fallthru
          _
        // Predicated region
        $region33: #{tpu_custom_call.1} parent=11 // pred_check
          %p404 = pneg %p276
        $region34: #{tpu_custom_call.1} parent=11 // pred_check_branch
          %406 = sbr.rel (%p404) target = $region36
        $region35: #{tpu_custom_call.1} parent=11 // pred_region
          _
        $region36: #{tpu_custom_call.1} parent=11 // pred_fallthru
          _
        // Predicated region
        $region37: #{tpu_custom_call.1} parent=11 // pred_check
          %p407 = pneg %p297
        $region38: #{tpu_custom_call.1} parent=11 // pred_check_branch
          %409 = sbr.rel (%p407) target = $region40
        $region39: #{tpu_custom_call.1} parent=11 // pred_region
          _
        $region40: #{tpu_custom_call.1} parent=11 // pred_fallthru
          _
        // Predicated region
        $region41: #{tpu_custom_call.1} parent=11 // pred_check
          %p410 = pneg %p318
        $region42: #{tpu_custom_call.1} parent=11 // pred_check_branch
          %412 = sbr.rel (%p410) target = $region44
        $region43: #{tpu_custom_call.1} parent=11 // pred_region
          _
        $region44: #{tpu_custom_call.1} parent=11 // pred_fallthru
          _
      $region12: #{tpu_custom_call.1} parent=5 // pred_fallthru
        _
      %p413 = scmp.lt.s32.totalorder %s26, 2
      // Predicated region
      $region45: #{tpu_custom_call.1} parent=5 // pred_check
        %p414 = pneg %p413
      $region46: #{tpu_custom_call.1} parent=5 // pred_check_branch
        %416 = sbr.rel (%p414) target = $region48
      $region47: #{tpu_custom_call.1} parent=5 // pred_region
        // Predicated region
        $region49: #{tpu_custom_call.1} parent=47 // pred_check
          %p417 = pneg %p60
        $region50: #{tpu_custom_call.1} parent=47 // pred_check_branch
          %419 = sbr.rel (%p417) target = $region52
        $region51: #{tpu_custom_call.1} parent=47 // pred_region
          %s420 = smul.u32 2, %s34
          %p421 = scmp.lt.s32.totalorder %s33, 1
          %s422 = scalar_select %p421, %s33, 1
          %p423 = scmp.lt.s32.totalorder %s420, 1
          %s424 = scalar_select %p423, %s420, 1
          %s425 = smul.addr %s422, 2
          %s426 = sadd.s32 %s424, %s425
          %s427 = smul.addr %s426, 4
          %s428 = scalar_lea.vmem %s0, %s427
          %s429 = smul.u32 2, %s34
        $region52: #{tpu_custom_call.1} parent=47 // pred_fallthru
          _
        // Predicated region
        $region53: #{tpu_custom_call.1} parent=47 // pred_check
          %p430 = pneg %p88
        $region54: #{tpu_custom_call.1} parent=47 // pred_check_branch
          %432 = sbr.rel (%p430) target = $region56
        $region55: #{tpu_custom_call.1} parent=47 // pred_region
          %s433 = smul.u32 2, %s34
          %p434 = scmp.lt.s32.totalorder %s33, 1
          %s435 = scalar_select %p434, %s33, 1
          %p436 = scmp.lt.s32.totalorder %s433, 1
          %s437 = scalar_select %p436, %s433, 1
          %s438 = smul.addr %s435, 2
          %s439 = sadd.s32 %s437, %s438
          %s440 = smul.addr %s439, 8
          %s441 = scalar_lea.vmem %s1, %s440
          %s442 = smul.u32 2, %s34
        $region56: #{tpu_custom_call.1} parent=47 // pred_fallthru
          _
        // Predicated region
        $region57: #{tpu_custom_call.1} parent=47 // pred_check
          %p443 = pneg %p116
        $region58: #{tpu_custom_call.1} parent=47 // pred_check_branch
          %445 = sbr.rel (%p443) target = $region60
        $region59: #{tpu_custom_call.1} parent=47 // pred_region
          %s446 = smul.u32 2, %s34
          %p447 = scmp.lt.s32.totalorder %s33, 1
          %s448 = scalar_select %p447, %s33, 1
          %p449 = scmp.lt.s32.totalorder %s446, 1
          %s450 = scalar_select %p449, %s446, 1
          %s451 = smul.addr %s448, 2
          %s452 = sadd.s32 %s450, %s451
          %s453 = smul.addr %s452, 4
          %s454 = scalar_lea.vmem %s2, %s453
          %s455 = smul.u32 2, %s34
        $region60: #{tpu_custom_call.1} parent=47 // pred_fallthru
          _
        // Predicated region
        $region61: #{tpu_custom_call.1} parent=47 // pred_check
          %p456 = pneg %p144
        $region62: #{tpu_custom_call.1} parent=47 // pred_check_branch
          %458 = sbr.rel (%p456) target = $region64
        $region63: #{tpu_custom_call.1} parent=47 // pred_region
          %s459 = smul.u32 2, %s34
          %p460 = scmp.lt.s32.totalorder %s33, 1
          %s461 = scalar_select %p460, %s33, 1
          %p462 = scmp.lt.s32.totalorder %s459, 1
          %s463 = scalar_select %p462, %s459, 1
          %s464 = smul.addr %s461, 2
          %s465 = sadd.s32 %s463, %s464
          %s466 = smul.addr %s465, 8
          %s467 = scalar_lea.vmem %s3, %s466
          %s468 = smul.u32 2, %s34
        $region64: #{tpu_custom_call.1} parent=47 // pred_fallthru
          _
      $region48: #{tpu_custom_call.1} parent=5 // pred_fallthru
        _
      %p469 = scmp.le.s32.totalorder 1, %s26
      %p470 = scmp.lt.s32.totalorder %s26, 3
      %p471 = pnand %p469, %p470
      %p472 = pneg %p471
      // Predicated region
      $region65: #{tpu_custom_call.1} parent=5 // pred_check
        _
      $region66: #{tpu_custom_call.1} parent=5 // pred_check_branch
        %474 = sbr.rel (%p471) target = $region68
      $region67: #{tpu_custom_call.1} parent=5 // pred_region
        %s475 = ssub.s32 %s26, 1
        %s476 = smul.u32 2, %s36
        %p477 = scmp.lt.s32.totalorder %s35, 1
        %s478 = scalar_select %p477, %s35, 1
        %p479 = scmp.lt.s32.totalorder %s476, 1
        %s480 = scalar_select %p479, %s476, 1
        %s481 = smul.addr %s478, 2
        %s482 = sadd.s32 %s480, %s481
        %s483 = smul.addr %s482, 4
        %s484 = scalar_lea.vmem %s0, %s483
        %p485 = pneg %p66
        %p486 = pneg %p63
        %s487 = smul.u32 2, %s36
        %p488 = scmp.lt.s32.totalorder %s35, 1
        %s489 = scalar_select %p488, %s35, 1
        %p490 = scmp.lt.s32.totalorder %s487, 1
        %s491 = scalar_select %p490, %s487, 1
        %s492 = smul.addr %s489, 2
        %s493 = sadd.s32 %s491, %s492
        %s494 = smul.addr %s493, 8
        %s495 = scalar_lea.vmem %s1, %s494
        %p496 = pneg %p94
        %p497 = pneg %p91
        %s498 = smul.u32 2, %s36
        %p499 = scmp.lt.s32.totalorder %s35, 1
        %s500 = scalar_select %p499, %s35, 1
        %p501 = scmp.lt.s32.totalorder %s498, 1
        %s502 = scalar_select %p501, %s498, 1
        %s503 = smul.addr %s500, 2
        %s504 = sadd.s32 %s502, %s503
        %s505 = smul.addr %s504, 4
        %s506 = scalar_lea.vmem %s2, %s505
        %p507 = pneg %p122
        %p508 = pneg %p119
        %s509 = smul.u32 2, %s36
        %p510 = scmp.lt.s32.totalorder %s35, 1
        %s511 = scalar_select %p510, %s35, 1
        %p512 = scmp.lt.s32.totalorder %s509, 1
        %s513 = scalar_select %p512, %s509, 1
        %s514 = smul.addr %s511, 2
        %s515 = sadd.s32 %s513, %s514
        %s516 = smul.addr %s515, 8
        %s517 = scalar_lea.vmem %s3, %s516
        %p518 = pneg %p150
        %p519 = pneg %p147
        %p520 = pneg %p171
        %p521 = pneg %p168
        %p522 = pneg %p192
        %p523 = pneg %p189
        %p524 = pneg %p213
        %p525 = pneg %p210
        %p526 = pneg %p234
        %p527 = pneg %p231
        %p528 = pneg %p255
        %p529 = pneg %p252
        %p530 = pneg %p276
        %p531 = pneg %p273
        %p532 = pneg %p297
        %p533 = pneg %p294
        %p534 = pneg %p318
        %p535 = pneg %p315
        %p536 = pneg %p346
        %p537 = pneg %p343
        %s538 = sand.u32 %s333, 1
        %s539 = scalar_lea.sflag [#allocation3], %s538
        %s540 = sand.u32 %s333, 1
        %s541 = smul.addr %s540, 48
        %s542 = scalar_lea.vmem [#allocation2], %s541
        %p543 = pneg %p374
        %p544 = pneg %p371
        %s545 = sand.u32 %s361, 1
        %s546 = scalar_lea.sflag [#allocation5], %s545
        %s547 = sand.u32 %s361, 1
        %s548 = smul.addr %s547, 48
        %s549 = scalar_lea.vmem [#allocation4], %s548
        %s550 = smul.u32 2, %s36
        %p551 = scmp.lt.s32.totalorder %s35, 1
        %s552 = scalar_select %p551, %s35, 1
        %p553 = scmp.lt.s32.totalorder %s550, 1
        %s554 = scalar_select %p553, %s550, 1
        %s555 = smul.addr %s552, 2
        %s556 = sadd.s32 %s554, %s555
        %s557 = smul.addr %s556, 4
        %s558 = scalar_lea.vmem %s0, %s557
        %s559 = smul.u32 2, %s36
        %s560 = smul.u32 2, %s36
        %p561 = scmp.lt.s32.totalorder %s35, 1
        %s562 = scalar_select %p561, %s35, 1
        %p563 = scmp.lt.s32.totalorder %s560, 1
        %s564 = scalar_select %p563, %s560, 1
        %s565 = smul.addr %s562, 2
        %s566 = sadd.s32 %s564, %s565
        %s567 = smul.addr %s566, 8
        %s568 = scalar_lea.vmem %s1, %s567
        %s569 = smul.u32 2, %s36
        %s570 = smul.u32 2, %s36
        %p571 = scmp.lt.s32.totalorder %s35, 1
        %s572 = scalar_select %p571, %s35, 1
        %p573 = scmp.lt.s32.totalorder %s570, 1
        %s574 = scalar_select %p573, %s570, 1
        %s575 = smul.addr %s572, 2
        %s576 = sadd.s32 %s574, %s575
        %s577 = smul.addr %s576, 4
        %s578 = scalar_lea.vmem %s2, %s577
        %s579 = smul.u32 2, %s36
        %s580 = smul.u32 2, %s36
        %p581 = scmp.lt.s32.totalorder %s35, 1
        %s582 = scalar_select %p581, %s35, 1
        %p583 = scmp.lt.s32.totalorder %s580, 1
        %s584 = scalar_select %p583, %s580, 1
        %s585 = smul.addr %s582, 2
        %s586 = sadd.s32 %s584, %s585
        %s587 = smul.addr %s586, 8
        %s588 = scalar_lea.vmem %s3, %s587
        %s589 = smul.u32 2, %s36
        %s590 = smul.u32 2, %s36
        %s591 = smul.u32 2, %s36
        %v592 = vld [vmem:[%s4] sm:$0xff]
        %v593 = vld [vmem:[%s558] sm:$0xff]
        %v594 = vld [vmem:[%s6] sm:$0xff]
        %596 = vset.pattern.permute.xlu0 0
        %597 = vperm.xlu0 %596, %v594
        %v598 = vpop.permute.xlu0 %597
        %601 = vst [vmem:[#allocation1] ss:$2 sm:$0xff] %v593
        %v602 = vld.sshfl [vmem:[#allocation1] sm:$0xff pattern:$0x75316420]
        %v603 = vld.sshfl [vmem:[#allocation1 + $0x8] sm:$0xff pattern:$0x75316420]
        %vm604 = vcmask 31744
        %v606 = vsel %vm604, %v592, 0
        %vm608 = vcmask 1043456
        %v609 = vsel %vm608, %v602, 0
        %v611 = vsel %vm608, %v603, 0
        %613 = vmatpush.msra.mxu0 0.0
        %614 = vmatpush.msra.mxu0 0.0
        %615 = vmatpush.msra.mxu0 0.0
        %616 = vmatpush.msra.mxu0 0.0
        %617 = vmatpush.msra.mxu0 0.0
        %618 = vmatpush.msra.mxu0 0.0
        %619 = vmatpush.msra.mxu0 0.0
        %620 = vmatpush.msra.mxu0 0.0
        %621 = vmatpush.msra.mxu0 0.0
        %622 = vmatpush.msra.mxu0 0.0
        %623 = vmatpush.msra.mxu0 0.0
        %624 = vmatpush.msra.mxu0 0.0
        %625 = vmatpush.msra.mxu0 0.0
        %626 = vmatpush.msra.mxu0 0.0
        %627 = vmatpush.msra.mxu0 0.0
        %628 = vmatpush.msra.mxu0 %v609
        %629 = vmatmul.f32.gmra.mxu0 %v606
        %v630 = vpop.f32.mrf.mxu0
        %v631 = vadd.f32 %v598, %v630
        %632 = vdwg.mxu0
        %633 = vmatpush.msra.mxu0 0.0
        %634 = vmatpush.msra.mxu0 0.0
        %635 = vmatpush.msra.mxu0 0.0
        %636 = vmatpush.msra.mxu0 0.0
        %637 = vmatpush.msra.mxu0 0.0
        %638 = vmatpush.msra.mxu0 0.0
        %639 = vmatpush.msra.mxu0 0.0
        %640 = vmatpush.msra.mxu0 0.0
        %641 = vmatpush.msra.mxu0 0.0
        %642 = vmatpush.msra.mxu0 0.0
        %643 = vmatpush.msra.mxu0 0.0
        %644 = vmatpush.msra.mxu0 0.0
        %645 = vmatpush.msra.mxu0 0.0
        %646 = vmatpush.msra.mxu0 0.0
        %647 = vmatpush.msra.mxu0 0.0
        %648 = vmatpush.msra.mxu0 %v611
        %649 = vmatmul.f32.gmra.mxu0 %v606
        %v650 = vpop.f32.mrf.mxu0
        %v651 = vadd.f32 %v598, %v650
        %652 = vdwg.mxu0
        %v653 = vmax.f32 %v631, 0.0
        %v654 = vmax.f32 %v651, 0.0
        %v655 = vld [vmem:[%s8] sm:$0xff]
        %v656 = vld [vmem:[%s578] sm:$0xff]
        %v657 = vld [vmem:[%s10] sm:$0xff]
        %659 = vset.pattern.permute.xlu0 0
        %660 = vperm.xlu0 %659, %v657
        %v661 = vpop.permute.xlu0 %660
        %664 = vst [vmem:[#allocation1] ss:$2 sm:$0xff] %v656
        %v665 = vld.sshfl [vmem:[#allocation1] sm:$0xff pattern:$0x75316420]
        %v666 = vld.sshfl [vmem:[#allocation1 + $0x8] sm:$0xff pattern:$0x75316420]
        %v668 = vsel %vm604, %v655, 0
        %v670 = vsel %vm608, %v665, 0
        %v672 = vsel %vm608, %v666, 0
        %674 = vmatpush.msra.mxu0 0.0
        %675 = vmatpush.msra.mxu0 0.0
        %676 = vmatpush.msra.mxu0 0.0
        %677 = vmatpush.msra.mxu0 0.0
        %678 = vmatpush.msra.mxu0 0.0
        %679 = vmatpush.msra.mxu0 0.0
        %680 = vmatpush.msra.mxu0 0.0
        %681 = vmatpush.msra.mxu0 0.0
        %682 = vmatpush.msra.mxu0 0.0
        %683 = vmatpush.msra.mxu0 0.0
        %684 = vmatpush.msra.mxu0 0.0
        %685 = vmatpush.msra.mxu0 0.0
        %686 = vmatpush.msra.mxu0 0.0
        %687 = vmatpush.msra.mxu0 0.0
        %688 = vmatpush.msra.mxu0 0.0
        %689 = vmatpush.msra.mxu0 %v670
        %690 = vmatmul.f32.gmra.mxu0 %v668
        %v691 = vpop.f32.mrf.mxu0
        %v692 = vadd.f32 %v661, %v691
        %693 = vdwg.mxu0
        %694 = vmatpush.msra.mxu0 0.0
        %695 = vmatpush.msra.mxu0 0.0
        %696 = vmatpush.msra.mxu0 0.0
        %697 = vmatpush.msra.mxu0 0.0
        %698 = vmatpush.msra.mxu0 0.0
        %699 = vmatpush.msra.mxu0 0.0
        %700 = vmatpush.msra.mxu0 0.0
        %701 = vmatpush.msra.mxu0 0.0
        %702 = vmatpush.msra.mxu0 0.0
        %703 = vmatpush.msra.mxu0 0.0
        %704 = vmatpush.msra.mxu0 0.0
        %705 = vmatpush.msra.mxu0 0.0
        %706 = vmatpush.msra.mxu0 0.0
        %707 = vmatpush.msra.mxu0 0.0
        %708 = vmatpush.msra.mxu0 0.0
        %709 = vmatpush.msra.mxu0 %v672
        %710 = vmatmul.f32.gmra.mxu0 %v668
        %v711 = vpop.f32.mrf.mxu0
        %v712 = vadd.f32 %v661, %v711
        %713 = vdwg.mxu0
        %v714 = vmax.f32 %v692, 0.0
        %v715 = vmax.f32 %v712, 0.0
        %v716 = vld [vmem:[%s5] sm:$0xff]
        %v717 = vld [vmem:[%s5 + $0x8] sm:$0xff]
        %v718 = vld [vmem:[%s568] sm:$0xff]
        %v719 = vld [vmem:[%s568 + $0x8] sm:$0xff]
        %v720 = vld [vmem:[%s7] sm:$0xff]
        %v721 = vld [vmem:[%s7 + $0x8] sm:$0xff]
        %723 = vset.pattern.permute.xlu0 0
        %724 = vperm.xlu0 %723, %v720
        %v725 = vpop.permute.xlu0 %724
        %728 = vset.pattern.permute.xlu0 0
        %729 = vperm.xlu0 %728, %v721
        %v730 = vpop.permute.xlu0 %729
        %vm732 = vcmask 64512
        %v734 = vsel %vm732, %v716, 0
        %v737 = vsel %vm732, %v717, 0
        %739 = vmatpush.msra.mxu0 0.0
        %740 = vmatpush.msra.mxu0 0.0
        %741 = vmatpush.msra.mxu0 0.0
        %742 = vmatpush.msra.mxu0 0.0
        %743 = vmatpush.msra.mxu0 0.0
        %744 = vmatpush.msra.mxu0 0.0
        %745 = vmatpush.msra.mxu0 0.0
        %746 = vmatpush.msra.mxu0 0.0
        %747 = vmatpush.msra.mxu0 0.0
        %748 = vmatpush.msra.mxu0 0.0
        %749 = vmatpush.msra.mxu0 0.0
        %750 = vmatpush.msra.mxu0 0.0
        %751 = vmatpush.msra.mxu0 0.0
        %752 = vmatpush.msra.mxu0 0.0
        %753 = vmatpush.msra.mxu0 0.0
        %754 = vmatpush.msra.mxu0 %v718
        %755 = vmatmul.f32.gmra.mxu0 %v734
        %v756 = vpop.f32.mrf.mxu0
        %v757 = vadd.f32 %v725, %v756
        %758 = vmatmul.f32.gmra.mxu0 %v737
        %v759 = vpop.f32.mrf.mxu0
        %v760 = vadd.f32 %v730, %v759
        %761 = vdwg.mxu0
        %762 = vmatpush.msra.mxu0 0.0
        %763 = vmatpush.msra.mxu0 0.0
        %764 = vmatpush.msra.mxu0 0.0
        %765 = vmatpush.msra.mxu0 0.0
        %766 = vmatpush.msra.mxu0 0.0
        %767 = vmatpush.msra.mxu0 0.0
        %768 = vmatpush.msra.mxu0 0.0
        %769 = vmatpush.msra.mxu0 0.0
        %770 = vmatpush.msra.mxu0 0.0
        %771 = vmatpush.msra.mxu0 0.0
        %772 = vmatpush.msra.mxu0 0.0
        %773 = vmatpush.msra.mxu0 0.0
        %774 = vmatpush.msra.mxu0 0.0
        %775 = vmatpush.msra.mxu0 0.0
        %776 = vmatpush.msra.mxu0 0.0
        %777 = vmatpush.msra.mxu0 %v719
        %778 = vmatmul.f32.gmra.mxu0 %v734
        %v779 = vpop.f32.mrf.mxu0
        %v780 = vadd.f32 %v725, %v779
        %781 = vmatmul.f32.gmra.mxu0 %v737
        %v782 = vpop.f32.mrf.mxu0
        %v783 = vadd.f32 %v730, %v782
        %784 = vdwg.mxu0
        %v785 = vmax.f32 %v757, 0.0
        %v786 = vmax.f32 %v780, 0.0
        %v787 = vmax.f32 %v760, 0.0
        %v788 = vmax.f32 %v783, 0.0
        %v789 = vld [vmem:[%s9] sm:$0xff]
        %v790 = vld [vmem:[%s9 + $0x8] sm:$0xff]
        %v791 = vld [vmem:[%s588] sm:$0xff]
        %v792 = vld [vmem:[%s588 + $0x8] sm:$0xff]
        %v793 = vld [vmem:[%s11] sm:$0xff]
        %v794 = vld [vmem:[%s11 + $0x8] sm:$0xff]
        %796 = vset.pattern.permute.xlu0 0
        %797 = vperm.xlu0 %796, %v793
        %v798 = vpop.permute.xlu0 %797
        %801 = vset.pattern.permute.xlu0 0
        %802 = vperm.xlu0 %801, %v794
        %v803 = vpop.permute.xlu0 %802
        %v806 = vsel %vm732, %v789, 0
        %v809 = vsel %vm732, %v790, 0
        %811 = vmatpush.msra.mxu0 0.0
        %812 = vmatpush.msra.mxu0 0.0
        %813 = vmatpush.msra.mxu0 0.0
        %814 = vmatpush.msra.mxu0 0.0
        %815 = vmatpush.msra.mxu0 0.0
        %816 = vmatpush.msra.mxu0 0.0
        %817 = vmatpush.msra.mxu0 0.0
        %818 = vmatpush.msra.mxu0 0.0
        %819 = vmatpush.msra.mxu0 0.0
        %820 = vmatpush.msra.mxu0 0.0
        %821 = vmatpush.msra.mxu0 0.0
        %822 = vmatpush.msra.mxu0 0.0
        %823 = vmatpush.msra.mxu0 0.0
        %824 = vmatpush.msra.mxu0 0.0
        %825 = vmatpush.msra.mxu0 0.0
        %826 = vmatpush.msra.mxu0 %v791
        %827 = vmatmul.f32.gmra.mxu0 %v806
        %v828 = vpop.f32.mrf.mxu0
        %v829 = vadd.f32 %v798, %v828
        %830 = vmatmul.f32.gmra.mxu0 %v809
        %v831 = vpop.f32.mrf.mxu0
        %v832 = vadd.f32 %v803, %v831
        %833 = vdwg.mxu0
        %834 = vmatpush.msra.mxu0 0.0
        %835 = vmatpush.msra.mxu0 0.0
        %836 = vmatpush.msra.mxu0 0.0
        %837 = vmatpush.msra.mxu0 0.0
        %838 = vmatpush.msra.mxu0 0.0
        %839 = vmatpush.msra.mxu0 0.0
        %840 = vmatpush.msra.mxu0 0.0
        %841 = vmatpush.msra.mxu0 0.0
        %842 = vmatpush.msra.mxu0 0.0
        %843 = vmatpush.msra.mxu0 0.0
        %844 = vmatpush.msra.mxu0 0.0
        %845 = vmatpush.msra.mxu0 0.0
        %846 = vmatpush.msra.mxu0 0.0
        %847 = vmatpush.msra.mxu0 0.0
        %848 = vmatpush.msra.mxu0 0.0
        %849 = vmatpush.msra.mxu0 %v792
        %850 = vmatmul.f32.gmra.mxu0 %v806
        %v851 = vpop.f32.mrf.mxu0
        %v852 = vadd.f32 %v798, %v851
        %853 = vmatmul.f32.gmra.mxu0 %v809
        %v854 = vpop.f32.mrf.mxu0
        %v855 = vadd.f32 %v803, %v854
        %856 = vdwg.mxu0
        %v857 = vmax.f32 %v829, 0.0
        %v858 = vmax.f32 %v852, 0.0
        %v859 = vmax.f32 %v832, 0.0
        %v860 = vmax.f32 %v855, 0.0
        %861 = vst [vmem:[%s542] sm:$0xff] %v653
        %862 = vst [vmem:[%s542 + $0x8] sm:$0xff] %v654
        %863 = vst [vmem:[%s542 + $0x10] sm:$0xff] %v785
        %864 = vst [vmem:[%s542 + $0x18] sm:$0xff] %v786
        %865 = vst [vmem:[%s542 + $0x20] sm:$0xff] %v787
        %866 = vst [vmem:[%s542 + $0x28] sm:$0xff] %v788
        %867 = vst [vmem:[%s549] sm:$0xff] %v714
        %868 = vst [vmem:[%s549 + $0x8] sm:$0xff] %v715
        %869 = vst [vmem:[%s549 + $0x10] sm:$0xff] %v857
        %870 = vst [vmem:[%s549 + $0x18] sm:$0xff] %v858
        %871 = vst [vmem:[%s549 + $0x20] sm:$0xff] %v859
        %872 = vst [vmem:[%s549 + $0x28] sm:$0xff] %v860
        %s873 = sand.u32 %s333, 1
        %s874 = scalar_lea.sflag [#allocation3], %s873
        %s875 = sand.u32 %s333, 1
        %s876 = smul.addr %s875, 48
        %s877 = scalar_lea.vmem [#allocation2], %s876
        %s878 = sand.u32 %s361, 1
        %s879 = scalar_lea.sflag [#allocation5], %s878
        %s880 = sand.u32 %s361, 1
        %s881 = smul.addr %s880, 48
        %s882 = scalar_lea.vmem [#allocation4], %s881
        // Predicated region
        $region69: #{tpu_custom_call.1} parent=67 // pred_check
          %p883 = pneg %p343
        $region70: #{tpu_custom_call.1} parent=67 // pred_check_branch
          %885 = sbr.rel (%p883) target = $region72
        $region71: #{tpu_custom_call.1} parent=67 // pred_region
          %s886 = smul.u32 2, %s36
          %888 = vsyncadd %s874, 0
          %s889 = smul.addr %s35, 6
          %s890 = sadd.s32 %s886, %s889
          %s891 = smul.addr %s890, 8
          %s892 = scalar_lea.hbm %s12, %s891
          %s893 = sshll.u32 %s877, 4
          %s894 = int_to_ptr.vmem [resolvable:$true] %s893
          %s895 = sshll.u32 %s892, 4
          %s896 = int_to_ptr.hbm [resolvable:$true] %s895
          %901 = dma.vmem_to_hbm [thread:$0]  %s894, 768, %s896, %s874, 256, 256, 16
        $region72: #{tpu_custom_call.1} parent=67 // pred_fallthru
          _
        // Predicated region
        $region73: #{tpu_custom_call.1} parent=67 // pred_check
          %p902 = pneg %p371
        $region74: #{tpu_custom_call.1} parent=67 // pred_check_branch
          %904 = sbr.rel (%p902) target = $region76
        $region75: #{tpu_custom_call.1} parent=67 // pred_region
          %s905 = smul.u32 2, %s36
          %907 = vsyncadd %s879, 0
          %s908 = smul.addr %s35, 6
          %s909 = sadd.s32 %s905, %s908
          %s910 = smul.addr %s909, 8
          %s911 = scalar_lea.hbm %s13, %s910
          %s912 = sshll.u32 %s882, 4
          %s913 = int_to_ptr.vmem [resolvable:$true] %s912
          %s914 = sshll.u32 %s911, 4
          %s915 = int_to_ptr.hbm [resolvable:$true] %s914
          %920 = dma.vmem_to_hbm [thread:$0]  %s913, 768, %s915, %s879, 256, 256, 16
        $region76: #{tpu_custom_call.1} parent=67 // pred_fallthru
          _
      $region68: #{tpu_custom_call.1} parent=5 // pred_fallthru
        _
      %p921 = scmp.le.s32.totalorder 2, %s26
      // Predicated region
      $region77: #{tpu_custom_call.1} parent=5 // pred_check
        %p922 = pneg %p921
      $region78: #{tpu_custom_call.1} parent=5 // pred_check_branch
        %924 = sbr.rel (%p922) target = $region80
      $region79: #{tpu_custom_call.1} parent=5 // pred_region
        %s925 = ssub.s32 %s26, 2
        // Predicated region
        $region81: #{tpu_custom_call.1} parent=79 // pred_check
          %p926 = pneg %p349
        $region82: #{tpu_custom_call.1} parent=79 // pred_check_branch
          %928 = sbr.rel (%p926) target = $region84
        $region83: #{tpu_custom_call.1} parent=79 // pred_region
          %s929 = sand.u32 %s334, 1
          %s930 = scalar_lea.sflag [#allocation3], %s929
          %s931 = sand.u32 %s334, 1
          %s932 = smul.addr %s931, 48
          %s933 = scalar_lea.vmem [#allocation2], %s932
          %935 = dma.done %s930, 768
        $region84: #{tpu_custom_call.1} parent=79 // pred_fallthru
          _
        // Predicated region
        $region85: #{tpu_custom_call.1} parent=79 // pred_check
          %p936 = pneg %p377
        $region86: #{tpu_custom_call.1} parent=79 // pred_check_branch
          %938 = sbr.rel (%p936) target = $region88
        $region87: #{tpu_custom_call.1} parent=79 // pred_region
          %s939 = sand.u32 %s362, 1
          %s940 = scalar_lea.sflag [#allocation5], %s939
          %s941 = sand.u32 %s362, 1
          %s942 = smul.addr %s941, 48
          %s943 = scalar_lea.vmem [#allocation4], %s942
          %945 = dma.done %s940, 768
        $region88: #{tpu_custom_call.1} parent=79 // pred_fallthru
          _
      $region80: #{tpu_custom_call.1} parent=5 // pred_fallthru
        _
    $region6: #{tpu_custom_call.1} parent=1 // loop_footer
      %s30 = sadd.s32 1, %s26
    $region7: #{tpu_custom_call.1} parent=1 // loop_footer_branch
      %25 = sbr.rel target = $region3
    $region8: #{tpu_custom_call.1} parent=1 // loop_exit
      _
    %946 = vsyncpa [#allocation3], 1
    %s947 = scalar_lea.sflag [#allocation3], 1
    %948 = vsyncpa %s947, 1
    %949 = vsyncpa [#allocation5], 1
    %s950 = scalar_lea.sflag [#allocation5], 1
    %951 = vsyncpa %s950, 1

</llo_original>
